<compile_context>
chip_gen: v6e
topology: v6e:2x2x1
jax: 0.10.0
libtpu: 0.0.40
codegen_flags: <defaults>
</compile_context>

<pallas_src>
import functools
import math

import jax
import jax.numpy as jnp
from jax import lax
from jax.experimental import pallas as pl
from jax.experimental.pallas import tpu as pltpu


def _round_up(a, b):
    return (a + b - 1) // b * b


def _normalize_centers_kernel(fc_ref, w_ref):
    """Column-wise L2 normalization (F.normalize(fc, p=2, dim=0)) of one (D, C_pad) center group."""
    w = fc_ref[...].astype(jnp.float32)
    sumsq = jnp.sum(w * w, axis=0, keepdims=True)                # (1, C_pad)
    # rsqrt(max(ss,1e-24)) == 1/max(||w||,1e-12): matches F.normalize eps, EUP instead of divide
    wn = w * lax.rsqrt(jnp.maximum(sumsq, 1e-24))
    w_ref[...] = wn.astype(w_ref.dtype)                          # f32, or bf16 for the bf16 MXU path


def _soft_triple_block_kernel(x_ref, t_ref, w_ref, out_ref, *,
                              n_valid, block_rows, num_classes, c_pad, centers_per_class,
                              la, gamma_inv, margin, exp_in_bf16):
    i = pl.program_id(0)

    x = x_ref[...].astype(jnp.float32)         # (TM, D)   row block of embeddings
    labels = t_ref[...]                        # (TM, 1)   int32 labels
    w = w_ref[...]                             # (D, K*C_pad) center-major normalized centers (resident)
    tm = x.shape[0]

    # ---- F.normalize(X): row L2 normalization via rsqrt (EUP) ----
    sumsq = jnp.sum(x * x, axis=1, keepdims=True)
    xn = x * lax.rsqrt(jnp.maximum(sumsq, 1e-24))                # == x / max(||x||, 1e-12)

    # ---- cosine similarity to every center: single MXU matmul ----
    s = jnp.dot(xn.astype(w.dtype), w, preferred_element_type=jnp.float32)   # (TM, K*C_pad)

    # ---- SoftTriple intra-class soft assignment ----
    # Center-major layout: center k of class c sits at lane column k*C_pad + c, so the per-class
    # group reductions over the K centers are K-1 unrolled VPU adds on lane-aligned slices
    # (no G matmul, no XLU group reductions).  The global row max cancels in the ratio.
    row_max = jnp.max(s, axis=1, keepdims=True)                  # (TM, 1)
    denom = None
    numer = None
    for k in range(centers_per_class):
        sk = s[:, k * c_pad:(k + 1) * c_pad]                     # (TM, C_pad) lane-aligned slice
        zk = gamma_inv * (sk - row_max)
        if exp_in_bf16:                                          # v6e/v7x EUP bf16 option (off by default)
            ek = jnp.exp(zk.astype(jnp.bfloat16)).astype(jnp.float32)
        else:
            ek = jnp.exp(zk)                                     # EUP
        nk = ek * sk
        denom = ek if denom is None else denom + ek
        numer = nk if numer is None else numer + nk

    denom = jnp.maximum(denom, 1e-30)                            # guard 0/0 for extreme gamma / inputs
    inv_denom = pl.reciprocal(denom, approx=True)                # EUP
    inv_denom = inv_denom * (2.0 - denom * inv_denom)            # one Newton step -> f32 accuracy
    sim_to_classes = numer * inv_denom                           # (TM, C_pad)

    # ---- margin + cross entropy over the valid classes ----
    class_iota = lax.broadcasted_iota(jnp.int32, (tm, c_pad), 1)
    onehot = (labels == class_iota).astype(jnp.float32)          # padded classes never match a label
    logits = la * (sim_to_classes - margin * onehot)
    logits = jnp.where(class_iota < num_classes, logits, -1e30)  # mask lane-padded class columns

    lmax = jnp.max(logits, axis=1, keepdims=True)
    lse = jnp.log(jnp.sum(jnp.exp(logits - lmax), axis=1, keepdims=True)) + lmax   # (TM, 1)
    logit_true = jnp.sum(logits * onehot, axis=1, keepdims=True)                   # (TM, 1)
    per_row = lse - logit_true                                                     # (TM, 1)

    # ---- mask padded rows, emit a lane-dense per-block partial sum ----
    row_iota = lax.broadcasted_iota(jnp.int32, (tm, 1), 0)
    valid = (i * block_rows + row_iota) < n_valid
    partial = jnp.sum(jnp.where(valid, per_row, 0.0))            # scalar partial

    out_ref[...] = jnp.broadcast_to(partial, (1, 8, 128))        # full unmasked vst tile


def soft_triple_loss_tpu(X, T, fc, *, centers_per_class=10, la=20.0, gamma=0.1, mrg=0.01,
                         block_rows=None, use_bf16_matmul=False, exp_in_bf16=False):
    """X: (N, D) float, T: (N,) int labels, fc: (D, nb_classes*centers_per_class) center parameter."""
    N, D = X.shape
    Dw, CK = fc.shape
    assert Dw == D and CK % centers_per_class == 0
    K = centers_per_class
    C = CK // K
    C_pad = _round_up(C, 128)          # lane-pad the class axis so per-center slices are lane aligned
    KCpad = K * C_pad

    # --- generation-aware sizing (v5e/v6e: 128 MiB VMEM, v7x: 64 MiB per TC) ---
    kind = jax.devices()[0].device_kind.lower()
    try:
        vmem_cap = int(pltpu.get_tpu_info().vmem_capacity_bytes)
    except Exception:
        vmem_cap = 128 * 1024 * 1024 if ("v5" in kind or "v6" in kind) else 64 * 1024 * 1024
    if "v7" in kind:
        vmem_cap = min(vmem_cap, 64 * 1024 * 1024)
    m_align = 128 if "v5" in kind else 256         # MXU M tile: 128 on v5e, 256 on v6e/v7x
    vmem_limit = int(vmem_cap * 3 // 4)
    budget = int(vmem_cap * 0.55)                  # leave headroom for compiler scratch / pipelining

    w_dtype = jnp.bfloat16 if use_bf16_matmul else jnp.float32

    # --- reorder center columns once: class-major [c*K+k] -> center-major [k*C_pad+c] (lane-padded) ---
    fc32 = fc.astype(jnp.float32)
    fc_cm = jnp.transpose(fc32.reshape(D, C, K), (0, 2, 1))             # (D, K, C)
    fc_cm = jnp.pad(fc_cm, ((0, 0), (0, 0), (0, C_pad - C))).reshape(D, KCpad)

    # --- normalize center columns, tiled over the K center groups (parameter-side kernel) ---
    w = pl.pallas_call(
        _normalize_centers_kernel,
        out_shape=jax.ShapeDtypeStruct((D, KCpad), w_dtype),
        grid=(K,),
        in_specs=[pl.BlockSpec((D, C_pad), lambda k: (0, k))],
        out_specs=pl.BlockSpec((D, C_pad), lambda k: (0, k)),
        compiler_params=pltpu.CompilerParams(
            dimension_semantics=("parallel",),
            vmem_limit_bytes=vmem_limit),
    )(fc_cm)

    # --- row-block tiling of the batch dim, accounting for resident W + double-buffered x/t/out ---
    w_bytes = D * KCpad * jnp.dtype(w_dtype).itemsize                    # single-buffered (Buffered(1))
    per_row_bytes = 4 * (3 * D + KCpad + 8 * C_pad)                      # dbl-buf x row + xn + s + temps
    fixed = w_bytes + 2 * (8 * 128 * 4) + 2 * 128 * 4                    # W + dbl-buffered out + t blocks
    avail = max(budget - fixed, m_align * per_row_bytes)
    tm_cap = max(m_align, (avail // per_row_bytes) // m_align * m_align)
    cap = block_rows if block_rows is not None else (512 if "v7" in kind else 1024)
    tm = min(int(cap), int(tm_cap), _round_up(N, m_align))
    tm = max(m_align, tm // m_align * m_align)                           # keep the MXU M dim full
    n_pad = _round_up(N, tm)
    num_blocks = n_pad // tm

    x = X.astype(jnp.float32)
    t = T.astype(jnp.int32).reshape(N, 1)
    if n_pad != N:
        x = jnp.pad(x, ((0, n_pad - N), (0, 0)))
        t = jnp.pad(t, ((0, n_pad - N), (0, 0)))

    kernel = functools.partial(
        _soft_triple_block_kernel,
        n_valid=N, block_rows=tm, num_classes=C, c_pad=C_pad, centers_per_class=K,
        la=float(la), gamma_inv=1.0 / float(gamma), margin=float(mrg),
        exp_in_bf16=bool(exp_in_bf16))

    def _call(single_buffer_w):
        if single_buffer_w:
            # constant index_map -> fetched once, kept single-buffered (halves W's VMEM footprint)
            w_spec = pl.BlockSpec((D, KCpad), lambda i: (0, 0), pipeline_mode=pl.Buffered(1))
        else:
            w_spec = pl.BlockSpec((D, KCpad), lambda i: (0, 0))
        return pl.pallas_call(
            kernel,
            out_shape=jax.ShapeDtypeStruct((num_blocks, 8, 128), jnp.float32),
            grid=(num_blocks,),
            in_specs=[
                pl.BlockSpec((tm, D), lambda i: (i, 0)),
                pl.BlockSpec((tm, 1), lambda i: (i, 0)),
                w_spec,
            ],
            out_specs=pl.BlockSpec((1, 8, 128), lambda i: (i, 0, 0)),
            compiler_params=pltpu.CompilerParams(
                dimension_semantics=("parallel",),          # shard row-blocks across v7x's 2 TCs
                vmem_limit_bytes=vmem_limit),
        )(x, t, w)

    try:
        partials = _call(True)
    except Exception:
        # pipeline_mode=pl.Buffered(1) not supported by this jax build: fall back to default buffering
        partials = _call(False)

    # MeanReducer over the N per-element cross-entropy losses (miner weights = 1, reg loss = 0)
    return jnp.sum(partials[:, 0, 0]) / jnp.float32(N)


def _soft_triple_loss_ref(X, T, fc, *, centers_per_class=10, la=20.0, gamma=0.1, mrg=0.01):
    """Pure-JAX reference mirroring pytorch_metric_learning SoftTripleLoss."""
    xn = X / jnp.maximum(jnp.linalg.norm(X, axis=1, keepdims=True), 1e-12)
    w = fc / jnp.maximum(jnp.linalg.norm(fc, axis=0, keepdims=True), 1e-12)
    C = fc.shape[1] // centers_per_class
    s = (xn @ w).reshape(X.shape[0], C, centers_per_class)
    prob = jax.nn.softmax(s * (1.0 / gamma), axis=2)
    sim_to_classes = jnp.sum(prob * s, axis=2)
    onehot = jax.nn.one_hot(T, C, dtype=jnp.float32)
    logits = la * (sim_to_classes - mrg * onehot)
    lse = jax.nn.logsumexp(logits, axis=1)
    return jnp.mean(lse - jnp.sum(logits * onehot, axis=1))


if __name__ == "__main__":
    nb_classes, sz_embed, centers_per_class = 4, 32, 10
    batch = 8
    key = jax.random.PRNGKey(0)
    kx, kt, kf = jax.random.split(key, 3)

    X = jax.random.normal(kx, (batch, sz_embed), dtype=jnp.float32)
    T = jax.random.randint(kt, (batch,), 0, nb_classes, dtype=jnp.int32)
    # fc parameter (torch default init kaiming_uniform_(a=sqrt(5)) -> U(-1/sqrt(fan_in), 1/sqrt(fan_in)))
    bound = 1.0 / math.sqrt(nb_classes * centers_per_class)
    fc = jax.random.uniform(kf, (sz_embed, nb_classes * centers_per_class),
                            minval=-bound, maxval=bound, dtype=jnp.float32)

    ref = _soft_triple_loss_ref(X, T, fc, centers_per_class=centers_per_class,
                                la=20.0, gamma=0.1, mrg=0.01)

    # default path: f32 MXU matmul, faithful to the torch f32 module
    loss = soft_triple_loss_tpu(X, T, fc, centers_per_class=centers_per_class,
                                la=20.0, gamma=0.1, mrg=0.01)
    jax.block_until_ready(loss)
    if not bool(jnp.allclose(loss, ref, rtol=1e-3, atol=1e-3)):
        raise AssertionError(f"kernel loss {float(loss)} != reference {float(ref)}")

    # bf16 MXU path (pre-cast W, f32 accumulation): smoke-check against a looser tolerance
    loss_bf16 = soft_triple_loss_tpu(X, T, fc, centers_per_class=centers_per_class,
                                     la=20.0, gamma=0.1, mrg=0.01, use_bf16_matmul=True)
    jax.block_until_ready(loss_bf16)
    if not bool(jnp.allclose(loss_bf16, ref, rtol=5e-2, atol=1.5e-1)):
        raise AssertionError(f"bf16 kernel loss {float(loss_bf16)} != reference {float(ref)}")

    print("KERNEL_OK")
</pallas_src>

<mosaic_0001>
module attributes {stable_mosaic.version = 11 : i64} {
  func.func @_normalize_centers_kernel(%arg0: i32, %arg1: memref<32x128xf32, #tpu.memory_space<vmem>>, %arg2: memref<32x128xf32, #tpu.memory_space<vmem>>) attributes {dimension_semantics = [#tpu.dimension_semantics<parallel>], iteration_bounds = array<i64: 10>, scalar_prefetch = 0 : i64, scratch_operands = 0 : i64, tpu.core_type = #tpu.core_type<tc>, window_params = [{transform_indices = @transform_0, window_bounds = array<i64: 32, 128>}, {transform_indices = @transform_1, window_bounds = array<i64: 32, 128>}]} {
    %c0 = arith.constant 0 : index
    %c0_0 = arith.constant 0 : index
    %0 = vector.load %arg1[%c0, %c0_0] : memref<32x128xf32, #tpu.memory_space<vmem>>, vector<32x128xf32>
    %1 = arith.mulf %0, %0 : vector<32x128xf32>
    %cst = arith.constant dense<0.000000e+00> : vector<128xf32>
    %2 = vector.multi_reduction <add>, %1, %cst [0] : vector<32x128xf32> to vector<128xf32>
    %3 = vector.shape_cast %2 : vector<128xf32> to vector<1x128xf32>
    %cst_1 = arith.constant 1.000000e-24 : f32
    %4 = vector.broadcast %cst_1 : f32 to vector<1x128xf32>
    %5 = arith.maximumf %3, %4 : vector<1x128xf32>
    %6 = math.rsqrt %5 : vector<1x128xf32>
    %7 = vector.broadcast %6 : vector<1x128xf32> to vector<32x128xf32>
    %8 = arith.mulf %0, %7 : vector<32x128xf32>
    %c0_2 = arith.constant 0 : index
    %c0_3 = arith.constant 0 : index
    %9 = vector.load %arg2[%c0_2, %c0_3] : memref<32x128xf32, #tpu.memory_space<vmem>>, vector<32x128xf32>
    tpu.vector_store %arg2[%c0_2, %c0_3], %8 {strides = array<i32>} : memref<32x128xf32, #tpu.memory_space<vmem>>, vector<32x128xf32>,
    return
  }
  func.func @transform_0(%arg0: i32) -> (i32, i32) {
    %c0_i32 = arith.constant 0 : i32
    %c0_i32_0 = arith.constant 0 : i32
    return %c0_i32, %arg0 : i32, i32
  }
  func.func @transform_1(%arg0: i32) -> (i32, i32) {
    %c0_i32 = arith.constant 0 : i32
    %c0_i32_0 = arith.constant 0 : i32
    return %c0_i32, %arg0 : i32, i32
  }
}

</mosaic_0001>

<llo_original>
// kernel: tpu_custom_call.1
$region0: #{tpu_custom_call.1}
  #allocation0 [shape = 'u32[]', space=smem, size = 0x4, offset = 0x4, fixed_abs, tag = 'smem constant byte address 0x4 - core index']
  #allocation1 [shape = 'u32[144,128]{1,0:T(1,128)}', space=vmem, size = 0x12000, scoped, tag = 'internal scratch']
  %s0 = inlined_call_operand.hbm [shape: f32[32,1280], index: 0, kind: input, shape index: {}]
  %s1 = inlined_call_operand.hbm [shape: f32[32,1280], index: 1, kind: output, shape index: {}]
  %s2 = sld [smem:[#allocation0]]
  $region41: #{tpu_custom_call.1} parent=0
    _
  %s4 = ssub.s32 1, %s2
  %s5 = scalar_select 0, %s4, %s2
  $region1: #{tpu_custom_call.1} parent=0
    #allocation2 [shape = 'u8[32768]{0}', space=vmem, size = 0x8000, scoped, tag = 'input window, operand 0']
    #allocation3 [shape = 's32[2]{0}', space=sflag, size = 0x8, scoped, tag = 'scoped memory for tpu_custom_call.1']
    #allocation4 [shape = 's32[2]{0}', space=sflag, size = 0x8, scoped, tag = 'scoped memory for tpu_custom_call.1']
    #allocation5 [shape = 'u8[32768]{0}', space=vmem, size = 0x8000, scoped, tag = 'output window, operand 0']
    %6 = vsyncpa [#allocation3], 0
    %s7 = scalar_lea.sflag [#allocation3], 1
    %8 = vsyncpa %s7, 0
    %9 = vsyncpa [#allocation4], 0
    %s10 = scalar_lea.sflag [#allocation4], 1
    %11 = vsyncpa %s10, 0
    loop: start=0, step=1, limit=12
    $region2: #{tpu_custom_call.1} parent=1 // loop_pre_header
      _
    $region3: #{tpu_custom_call.1} parent=1 // loop_header
      %s13 = sphi 0, %s17
      %p14 = scmp.ge.s32.totalorder %s13, 12
      %s23 = sphi 0, %s25
      %s26 = sphi 0, %s23
      %s27 = sphi 0, %s26
      %s43 = sphi 0, %s27
      %s49 = sphi 0, %s51
      %s52 = sphi 0, %s49
      %s53 = sphi 0, %s52
      %s69 = sphi 0, %s53
    $region4: #{tpu_custom_call.1} parent=1 // loop_header_branch
      %16 = sbr.rel (%p14) target = $region8
    $region5: #{tpu_custom_call.1} parent=1 // loop_body
      %s18 = ssub.s32 %s13, 1
      %s19 = ssub.s32 %s13, 2
      %s20 = sadd.s32 %s13, 1
      %s21 = ssub.s32 %s13, %s20
      %p22 = scmp.eq.s32.totalorder %s21, 0
      %s24 = sadd.s32 %s23, 1
      %s25 = scalar_select %p22, %s23, %s24
      %p28 = pneg %p22
      %p29 = scmp.eq.s32.totalorder %s13, 9
      %p30 = por %p28, %p29
      %p31 = scmp.ne.s32.totalorder %s23, %s26
      %p32 = scmp.eq.s32.totalorder %s13, 0
      %p33 = por %p31, %p32
      %p34 = scmp.ne.s32.totalorder %s23, %s26
      %p35 = scmp.eq.s32.totalorder %s18, 9
      %p36 = por %p34, %p35
      %p37 = scmp.ne.s32.totalorder %s26, %s27
      %p38 = scmp.eq.s32.totalorder %s18, 0
      %p39 = por %p37, %p38
      %p40 = scmp.ne.s32.totalorder %s26, %s27
      %p41 = scmp.eq.s32.totalorder %s19, 9
      %p42 = por %p40, %p41
      %p44 = scmp.ne.s32.totalorder %s27, %s43
      %p45 = scmp.eq.s32.totalorder %s19, 0
      %p46 = por %p44, %p45
      %s47 = ssub.s32 %s13, %s20
      %p48 = scmp.eq.s32.totalorder %s47, 0
      %s50 = sadd.s32 %s49, 1
      %s51 = scalar_select %p48, %s49, %s50
      %p54 = pneg %p48
      %p55 = scmp.eq.s32.totalorder %s13, 9
      %p56 = por %p54, %p55
      %p57 = scmp.ne.s32.totalorder %s49, %s52
      %p58 = scmp.eq.s32.totalorder %s13, 0
      %p59 = por %p57, %p58
      %p60 = scmp.ne.s32.totalorder %s49, %s52
      %p61 = scmp.eq.s32.totalorder %s18, 9
      %p62 = por %p60, %p61
      %p63 = scmp.ne.s32.totalorder %s52, %s53
      %p64 = scmp.eq.s32.totalorder %s18, 0
      %p65 = por %p63, %p64
      %p66 = scmp.ne.s32.totalorder %s52, %s53
      %p67 = scmp.eq.s32.totalorder %s19, 9
      %p68 = por %p66, %p67
      %p70 = scmp.ne.s32.totalorder %s53, %s69
      %p71 = scmp.eq.s32.totalorder %s19, 0
      %p72 = por %p70, %p71
      %p73 = scmp.le.s32.totalorder 1, %s13
      %p74 = scmp.lt.s32.totalorder %s13, 11
      %p75 = pnand %p73, %p74
      %p76 = pneg %p75
      // Predicated region
      $region9: #{tpu_custom_call.1} parent=5 // pred_check
        _
      $region10: #{tpu_custom_call.1} parent=5 // pred_check_branch
        %78 = sbr.rel (%p75) target = $region12
      $region11: #{tpu_custom_call.1} parent=5 // pred_region
        %s79 = ssub.s32 %s13, 1
      $region12: #{tpu_custom_call.1} parent=5 // pred_fallthru
        _
      %p80 = scmp.lt.s32.totalorder %s13, 10
      // Predicated region
      $region13: #{tpu_custom_call.1} parent=5 // pred_check
        %p81 = pneg %p80
      $region14: #{tpu_custom_call.1} parent=5 // pred_check_branch
        %83 = sbr.rel (%p81) target = $region16
      $region15: #{tpu_custom_call.1} parent=5 // pred_region
        // Predicated region
        $region17: #{tpu_custom_call.1} parent=15 // pred_check
          %p84 = pneg %p33
        $region18: #{tpu_custom_call.1} parent=15 // pred_check_branch
          %86 = sbr.rel (%p84) target = $region20
        $region19: #{tpu_custom_call.1} parent=15 // pred_region
          %s87 = sand.u32 %s23, 1
          %s88 = scalar_lea.sflag [#allocation3], %s87
          %s89 = sand.u32 %s23, 1
          %s90 = smul.addr %s89, 32
          %s91 = scalar_lea.vmem [#allocation2], %s90
          %s93 = ssub.s32 512, 512
          %94 = vsyncadd %s88, %s93
          %s95 = smul.addr %s13, 128
          %s96 = scalar_lea.hbm %s0, %s95
          %s97 = sshll.u32 %s91, 4
          %s98 = int_to_ptr.vmem [resolvable:$true] %s97
          %103 = dma.hbm_to_vmem [thread:$0]  %s96, 512, %s98, %s88, 1280, 128, 8
        $region20: #{tpu_custom_call.1} parent=15 // pred_fallthru
          _
      $region16: #{tpu_custom_call.1} parent=5 // pred_fallthru
        _
      %p104 = scmp.le.s32.totalorder 1, %s13
      %p105 = scmp.lt.s32.totalorder %s13, 11
      %p106 = pnand %p104, %p105
      %p107 = pneg %p106
      // Predicated region
      $region21: #{tpu_custom_call.1} parent=5 // pred_check
        _
      $region22: #{tpu_custom_call.1} parent=5 // pred_check_branch
        %109 = sbr.rel (%p106) target = $region24
      $region23: #{tpu_custom_call.1} parent=5 // pred_region
        %s110 = ssub.s32 %s13, 1
        %s111 = sand.u32 %s26, 1
        %s112 = scalar_lea.sflag [#allocation3], %s111
        %s113 = sand.u32 %s26, 1
        %s114 = smul.addr %s113, 32
        %s115 = scalar_lea.vmem [#allocation2], %s114
        // Predicated region
        $region25: #{tpu_custom_call.1} parent=23 // pred_check
          %p116 = pneg %p39
        $region26: #{tpu_custom_call.1} parent=23 // pred_check_branch
          %118 = sbr.rel (%p116) target = $region28
        $region27: #{tpu_custom_call.1} parent=23 // pred_region
          %119 = dma.done %s112, 512
        $region28: #{tpu_custom_call.1} parent=23 // pred_fallthru
          _
        %s120 = sand.u32 %s26, 1
        %s121 = scalar_lea.sflag [#allocation3], %s120
        %s122 = sand.u32 %s26, 1
        %s123 = smul.addr %s122, 32
        %s124 = scalar_lea.vmem [#allocation2], %s123
        %p125 = pneg %p39
        %p126 = pneg %p36
        %p127 = pneg %p65
        %p128 = pneg %p62
        %s129 = sand.u32 %s52, 1
        %s130 = scalar_lea.sflag [#allocation4], %s129
        %s131 = sand.u32 %s52, 1
        %s132 = smul.addr %s131, 32
        %s133 = scalar_lea.vmem [#allocation5], %s132
        %v134 = vld [vmem:[%s115] sm:$0xff]
        %v135 = vld [vmem:[%s115 + $0x8] sm:$0xff]
        %v136 = vld [vmem:[%s115 + $0x10] sm:$0xff]
        %v137 = vld [vmem:[%s115 + $0x18] sm:$0xff]
        %v138 = vmul.f32 %v134, %v134
        %v139 = vmul.f32 %v135, %v135
        %v140 = vmul.f32 %v136, %v136
        %v141 = vmul.f32 %v137, %v137
        %v142 = vadd.f32 %v138, %v139
        %v143 = vadd.f32 %v142, %v140
        %v144 = vadd.f32 %v143, %v141
        %v145 = vrot.slane %v144, 4
        %v146 = vadd.f32 %v144, %v145
        %v147 = vrot.slane %v146, 2
        %v148 = vadd.f32 %v146, %v147
        %v149 = vrot.slane %v148, 1
        %v150 = vadd.f32 %v148, %v149
        %v151 = vmax.f32 %v150, 1e-24
        %v152 = vrsqrt.pop %v151
        %v153 = vmul.f32 %v134, %v152
        %v154 = vmul.f32 %v135, %v152
        %v155 = vmul.f32 %v136, %v152
        %v156 = vmul.f32 %v137, %v152
        %157 = vst [vmem:[%s133] sm:$0xff] %v153
        %158 = vst [vmem:[%s133 + $0x8] sm:$0xff] %v154
        %159 = vst [vmem:[%s133 + $0x10] sm:$0xff] %v155
        %160 = vst [vmem:[%s133 + $0x18] sm:$0xff] %v156
        %s161 = sand.u32 %s52, 1
        %s162 = scalar_lea.sflag [#allocation4], %s161
        %s163 = sand.u32 %s52, 1
        %s164 = smul.addr %s163, 32
        %s165 = scalar_lea.vmem [#allocation5], %s164
        // Predicated region
        $region29: #{tpu_custom_call.1} parent=23 // pred_check
          %p166 = pneg %p62
        $region30: #{tpu_custom_call.1} parent=23 // pred_check_branch
          %168 = sbr.rel (%p166) target = $region32
        $region31: #{tpu_custom_call.1} parent=23 // pred_region
          %s170 = ssub.s32 512, 512
          %171 = vsyncadd %s162, %s170
          %s172 = smul.addr %s18, 128
          %s173 = scalar_lea.hbm %s1, %s172
          %s174 = sshll.u32 %s165, 4
          %s175 = int_to_ptr.vmem [resolvable:$true] %s174
          %180 = dma.vmem_to_hbm [thread:$0]  %s175, 512, %s173, %s162, 128, 1280, 8
        $region32: #{tpu_custom_call.1} parent=23 // pred_fallthru
          _
      $region24: #{tpu_custom_call.1} parent=5 // pred_fallthru
        _
      %p181 = scmp.le.s32.totalorder 2, %s13
      // Predicated region
      $region33: #{tpu_custom_call.1} parent=5 // pred_check
        %p182 = pneg %p181
      $region34: #{tpu_custom_call.1} parent=5 // pred_check_branch
        %184 = sbr.rel (%p182) target = $region36
      $region35: #{tpu_custom_call.1} parent=5 // pred_region
        %s185 = ssub.s32 %s13, 2
        // Predicated region
        $region37: #{tpu_custom_call.1} parent=35 // pred_check
          %p186 = pneg %p68
        $region38: #{tpu_custom_call.1} parent=35 // pred_check_branch
          %188 = sbr.rel (%p186) target = $region40
        $region39: #{tpu_custom_call.1} parent=35 // pred_region
          %s189 = sand.u32 %s53, 1
          %s190 = scalar_lea.sflag [#allocation4], %s189
          %s191 = sand.u32 %s53, 1
          %s192 = smul.addr %s191, 32
          %s193 = scalar_lea.vmem [#allocation5], %s192
          %194 = dma.done %s190, 512
        $region40: #{tpu_custom_call.1} parent=35 // pred_fallthru
          _
      $region36: #{tpu_custom_call.1} parent=5 // pred_fallthru
        _
    $region6: #{tpu_custom_call.1} parent=1 // loop_footer
      %s17 = sadd.s32 1, %s13
    $region7: #{tpu_custom_call.1} parent=1 // loop_footer_branch
      %12 = sbr.rel target = $region3
    $region8: #{tpu_custom_call.1} parent=1 // loop_exit
      _
    %195 = vsyncpa [#allocation3], 1
    %s196 = scalar_lea.sflag [#allocation3], 1
    %197 = vsyncpa %s196, 1
    %198 = vsyncpa [#allocation4], 1
    %s199 = scalar_lea.sflag [#allocation4], 1
    %200 = vsyncpa %s199, 1

</llo_original>
